<compile_context>
chip_gen: v7x
topology: tpu7x:2x2x1
jax: 0.10.0
libtpu: 0.0.40
codegen_flags: <defaults>
</compile_context>

<pallas_src>
import functools

import jax
import jax.numpy as jnp
from jax.experimental import pallas as pl
from jax.experimental.pallas import tpu as pltpu


def _round_up(x, m):
    return (x + m - 1) // m * m


def _pad2(a, rows, cols):
    r, c = a.shape
    return jnp.pad(a, ((0, rows - r), (0, cols - c)))


def _make_fused_mlp_kernel(num_layers_total, activation):
    """Fused o = L_n(act(L_{n-1}(... act(L_0(x)) ...))) — everything stays in VMEM."""

    def kernel(*refs):
        x_ref, o_ref = refs[0], refs[-1]
        wb = refs[1:-1]                       # (w0, b0, w1, b1, ..., wn, bn)
        h = x_ref[...]                        # (tm, K0) f32 batch tile
        for li in range(num_layers_total):    # static Python unroll over layers
            w = wb[2 * li][...]               # (Kin_pad, Kout_pad), resident
            b = wb[2 * li + 1][...]           # (1, Kout_pad)
            h = jnp.dot(h, w, preferred_element_type=jnp.float32) + b
            if li < num_layers_total - 1:     # no activation on the classifier
                if activation == "relu":
                    h = jnp.maximum(h, 0.0)
                elif activation == "tanh":
                    h = jnp.tanh(h)
                elif activation == "sigmoid":
                    h = jax.nn.sigmoid(h)
        o_ref[...] = h.astype(o_ref.dtype)

    return kernel


def dummy_nn_forward(x, params, activation, *, tm=128):
    """x: (B, C, H, W) -> logits (B, num_classes). Whole MLP is one Pallas kernel."""
    B = x.shape[0]
    h = x.reshape(B, -1).astype(jnp.float32)  # == torch x.view(B, -1) (NCHW row-major)
    num_classes = params[-1][0].shape[1]

    # Lane-dense padding of every feature dim (multiple of 128). Zero-padded
    # weight rows/cols guarantee the padded lanes never leak into real outputs
    # (even when sigmoid(0)=0.5 appears in a padded column, the next layer's
    # zero weight rows kill it).
    dims = [h.shape[1]] + [w.shape[1] for (w, _) in params]
    pdims = [_round_up(d, 128) for d in dims]

    # Batch tiling: full-height MXU tiles, clamped for small B (multiple of 8).
    tm = min(tm, _round_up(B, 8))
    B_pad = _round_up(B, tm)
    h = _pad2(h, B_pad, pdims[0])

    args = [h]
    in_specs = [pl.BlockSpec((tm, pdims[0]), lambda i: (i, 0))]
    for li, (w, b) in enumerate(params):
        kin, kout = pdims[li], pdims[li + 1]
        args.append(_pad2(w.astype(jnp.float32), kin, kout))
        args.append(_pad2(b.reshape(1, -1).astype(jnp.float32), 1, kout))
        in_specs.append(pl.BlockSpec((kin, kout), lambda i: (0, 0)))  # resident weight
        in_specs.append(pl.BlockSpec((1, kout), lambda i: (0, 0)))    # resident bias

    # TODO(synk): if layer_size / input_size ever grow to multi-MiB weights
    # (esp. on v7x's 64 MiB VMEM), switch to a K-tiled grid axis with a VMEM
    # f32 accumulator + pl.when init/finalize instead of fully-resident weights,
    # and cast matmul inputs to bf16 for the v6e/v7x MXU.
    out = pl.pallas_call(
        _make_fused_mlp_kernel(len(params), activation),
        out_shape=jax.ShapeDtypeStruct((B_pad, pdims[-1]), jnp.float32),
        grid_spec=pl.GridSpec(
            grid=(B_pad // tm,),
            in_specs=in_specs,
            out_specs=pl.BlockSpec((tm, pdims[-1]), lambda i: (i, 0)),
        ),
        compiler_params=pltpu.CompilerParams(
            dimension_semantics=("parallel",),
        ),
    )(*args)
    return out[:B, :num_classes]


def init_dummy_nn_params(key, input_size, num_classes, num_layers, layer_size):
    """Deterministic init matching DummyNN's nn.Linear shapes.

    PyTorch Linear stores weight as (out, in); we store the transposed (in, out)
    so the kernel computes x @ W directly.
    """
    params = []
    in_dim = input_size
    dims = [layer_size] * num_layers + [num_classes]
    for out_dim in dims:
        key, kw, kb = jax.random.split(key, 3)
        bound = 1.0 / jnp.sqrt(in_dim)  # same scale as torch's default uniform init
        w = jax.random.uniform(kw, (in_dim, out_dim), jnp.float32, -bound, bound)
        b = jax.random.uniform(kb, (out_dim,), jnp.float32, -bound, bound)
        params.append((w, b))
        in_dim = out_dim
    return params


def _reference_forward(x, params, activation):
    B = x.shape[0]
    h = x.reshape(B, -1)
    n_hidden = len(params) - 1
    for i, (w, b) in enumerate(params):
        h = h @ w + b
        if i < n_hidden:
            if activation == "relu":
                h = jnp.maximum(h, 0.0)
            elif activation == "tanh":
                h = jnp.tanh(h)
            elif activation == "sigmoid":
                h = jax.nn.sigmoid(h)
    return h


if __name__ == "__main__":
    # Shapes consistent with DummyNN; B=256 gives a 2-step parallel batch grid.
    B, C, H, W = 256, 4, 8, 8          # input_size = C*H*W = 256
    input_size = C * H * W
    num_classes = 10
    num_layers = 2
    layer_size = 128
    activation = "relu"

    key = jax.random.PRNGKey(0)
    kx, kp = jax.random.split(key)
    x = jax.random.normal(kx, (B, C, H, W), jnp.float32)
    params = init_dummy_nn_params(kp, input_size, num_classes, num_layers, layer_size)

    fwd = jax.jit(functools.partial(dummy_nn_forward, activation=activation))
    out = fwd(x, params)
    out = jax.block_until_ready(out)

    ref = _reference_forward(x, params, activation)
    assert out.shape == (B, num_classes)
    assert jnp.allclose(out, ref, atol=1e-4, rtol=1e-4)

    print("KERNEL_OK")
</pallas_src>

<mosaic_0001>
module attributes {stable_mosaic.version = 11 : i64} {
  func.func @kernel(%arg0: i32, %arg1: memref<128x256xf32, #tpu.memory_space<vmem>>, %arg2: memref<256x128xf32, #tpu.memory_space<vmem>>, %arg3: memref<1x128xf32, #tpu.memory_space<vmem>>, %arg4: memref<128x128xf32, #tpu.memory_space<vmem>>, %arg5: memref<1x128xf32, #tpu.memory_space<vmem>>, %arg6: memref<128x128xf32, #tpu.memory_space<vmem>>, %arg7: memref<1x128xf32, #tpu.memory_space<vmem>>, %arg8: memref<128x128xf32, #tpu.memory_space<vmem>>) attributes {dimension_semantics = [#tpu.dimension_semantics<parallel>], iteration_bounds = array<i64: 2>, scalar_prefetch = 0 : i64, scratch_operands = 0 : i64, tpu.core_type = #tpu.core_type<tc>, window_params = [{transform_indices = @transform_0, window_bounds = array<i64: 128, 256>}, {pipeline_mode = #tpu.pipeline_mode<synchronous>, transform_indices = @transform_1, window_bounds = array<i64: 256, 128>}, {pipeline_mode = #tpu.pipeline_mode<synchronous>, transform_indices = @transform_2, window_bounds = array<i64: 1, 128>}, {pipeline_mode = #tpu.pipeline_mode<synchronous>, transform_indices = @transform_3, window_bounds = array<i64: 128, 128>}, {pipeline_mode = #tpu.pipeline_mode<synchronous>, transform_indices = @transform_4, window_bounds = array<i64: 1, 128>}, {pipeline_mode = #tpu.pipeline_mode<synchronous>, transform_indices = @transform_5, window_bounds = array<i64: 128, 128>}, {pipeline_mode = #tpu.pipeline_mode<synchronous>, transform_indices = @transform_6, window_bounds = array<i64: 1, 128>}, {transform_indices = @transform_7, window_bounds = array<i64: 128, 128>}]} {
    %c0 = arith.constant 0 : index
    %c0_0 = arith.constant 0 : index
    %0 = vector.load %arg1[%c0, %c0_0] : memref<128x256xf32, #tpu.memory_space<vmem>>, vector<128x256xf32>
    %c0_1 = arith.constant 0 : index
    %c0_2 = arith.constant 0 : index
    %1 = vector.load %arg2[%c0_1, %c0_2] : memref<256x128xf32, #tpu.memory_space<vmem>>, vector<256x128xf32>
    %c0_3 = arith.constant 0 : index
    %c0_4 = arith.constant 0 : index
    %2 = vector.load %arg3[%c0_3, %c0_4] : memref<1x128xf32, #tpu.memory_space<vmem>>, vector<1x128xf32>
    %cst = arith.constant dense<0.000000e+00> : vector<128x128xf32>
    %3 = tpu.matmul %0, %1, %cst {dimension_numbers = #tpu.dot_dimension_numbers<[1], [0], [0], [1], [0, 0, 1, 1], [], []>} : vector<128x256xf32>, vector<256x128xf32>, vector<128x128xf32> -> vector<128x128xf32>
    %4 = vector.broadcast %2 : vector<1x128xf32> to vector<128x128xf32>
    %5 = arith.addf %3, %4 : vector<128x128xf32>
    %cst_5 = arith.constant 0.000000e+00 : f32
    %6 = vector.broadcast %cst_5 : f32 to vector<128x128xf32>
    %7 = arith.maximumf %5, %6 : vector<128x128xf32>
    %c0_6 = arith.constant 0 : index
    %c0_7 = arith.constant 0 : index
    %8 = vector.load %arg4[%c0_6, %c0_7] : memref<128x128xf32, #tpu.memory_space<vmem>>, vector<128x128xf32>
    %c0_8 = arith.constant 0 : index
    %c0_9 = arith.constant 0 : index
    %9 = vector.load %arg5[%c0_8, %c0_9] : memref<1x128xf32, #tpu.memory_space<vmem>>, vector<1x128xf32>
    %cst_10 = arith.constant dense<0.000000e+00> : vector<128x128xf32>
    %10 = tpu.matmul %7, %8, %cst_10 {dimension_numbers = #tpu.dot_dimension_numbers<[1], [0], [0], [1], [0, 0, 1, 1], [], []>} : vector<128x128xf32>, vector<128x128xf32>, vector<128x128xf32> -> vector<128x128xf32>
    %11 = vector.broadcast %9 : vector<1x128xf32> to vector<128x128xf32>
    %12 = arith.addf %10, %11 : vector<128x128xf32>
    %cst_11 = arith.constant 0.000000e+00 : f32
    %13 = vector.broadcast %cst_11 : f32 to vector<128x128xf32>
    %14 = arith.maximumf %12, %13 : vector<128x128xf32>
    %c0_12 = arith.constant 0 : index
    %c0_13 = arith.constant 0 : index
    %15 = vector.load %arg6[%c0_12, %c0_13] : memref<128x128xf32, #tpu.memory_space<vmem>>, vector<128x128xf32>
    %c0_14 = arith.constant 0 : index
    %c0_15 = arith.constant 0 : index
    %16 = vector.load %arg7[%c0_14, %c0_15] : memref<1x128xf32, #tpu.memory_space<vmem>>, vector<1x128xf32>
    %cst_16 = arith.constant dense<0.000000e+00> : vector<128x128xf32>
    %17 = tpu.matmul %14, %15, %cst_16 {dimension_numbers = #tpu.dot_dimension_numbers<[1], [0], [0], [1], [0, 0, 1, 1], [], []>} : vector<128x128xf32>, vector<128x128xf32>, vector<128x128xf32> -> vector<128x128xf32>
    %18 = vector.broadcast %16 : vector<1x128xf32> to vector<128x128xf32>
    %19 = arith.addf %17, %18 : vector<128x128xf32>
    %c0_17 = arith.constant 0 : index
    %c0_18 = arith.constant 0 : index
    %20 = vector.load %arg8[%c0_17, %c0_18] : memref<128x128xf32, #tpu.memory_space<vmem>>, vector<128x128xf32>
    tpu.vector_store %arg8[%c0_17, %c0_18], %19 {strides = array<i32>} : memref<128x128xf32, #tpu.memory_space<vmem>>, vector<128x128xf32>,
    return
  }
  func.func @transform_0(%arg0: i32) -> (i32, i32) {
    %c0_i32 = arith.constant 0 : i32
    %c0_i32_0 = arith.constant 0 : i32
    return %arg0, %c0_i32 : i32, i32
  }
  func.func @transform_1(%arg0: i32) -> (i32, i32) {
    %c0_i32 = arith.constant 0 : i32
    %c0_i32_0 = arith.constant 0 : i32
    %c0_i32_1 = arith.constant 0 : i32
    return %c0_i32, %c0_i32_0 : i32, i32
  }
  func.func @transform_2(%arg0: i32) -> (i32, i32) {
    %c0_i32 = arith.constant 0 : i32
    %c0_i32_0 = arith.constant 0 : i32
    %c0_i32_1 = arith.constant 0 : i32
    return %c0_i32, %c0_i32_0 : i32, i32
  }
  func.func @transform_3(%arg0: i32) -> (i32, i32) {
    %c0_i32 = arith.constant 0 : i32
    %c0_i32_0 = arith.constant 0 : i32
    %c0_i32_1 = arith.constant 0 : i32
    return %c0_i32, %c0_i32_0 : i32, i32
  }
  func.func @transform_4(%arg0: i32) -> (i32, i32) {
    %c0_i32 = arith.constant 0 : i32
    %c0_i32_0 = arith.constant 0 : i32
    %c0_i32_1 = arith.constant 0 : i32
    return %c0_i32, %c0_i32_0 : i32, i32
  }
  func.func @transform_5(%arg0: i32) -> (i32, i32) {
    %c0_i32 = arith.constant 0 : i32
    %c0_i32_0 = arith.constant 0 : i32
    %c0_i32_1 = arith.constant 0 : i32
    return %c0_i32, %c0_i32_0 : i32, i32
  }
  func.func @transform_6(%arg0: i32) -> (i32, i32) {
    %c0_i32 = arith.constant 0 : i32
    %c0_i32_0 = arith.constant 0 : i32
    %c0_i32_1 = arith.constant 0 : i32
    return %c0_i32, %c0_i32_0 : i32, i32
  }
  func.func @transform_7(%arg0: i32) -> (i32, i32) {
    %c0_i32 = arith.constant 0 : i32
    %c0_i32_0 = arith.constant 0 : i32
    return %arg0, %c0_i32 : i32, i32
  }
}

</mosaic_0001>

<llo_original>
// kernel: dummy_nn_forward.1
$region0: #{dummy_nn_forward.1}
  #allocation0 [shape = 'u32[]', space=smem, size = 0x4, offset = 0x4, fixed_abs, tag = 'smem constant byte address 0x4 - core index']
  #allocation1 [shape = 'u32[144,128]{1,0:T(1,128)}', space=vmem, size = 0x12000, scoped, tag = 'internal scratch']
  %s0 = inlined_call_operand.vmem [shape: f32[256,256], index: 0, kind: input, shape index: {}]
  %s1 = inlined_call_operand.vmem [shape: f32[256,128], index: 1, kind: input, shape index: {}]
  %s2 = inlined_call_operand.vmem [shape: f32[1,128], index: 2, kind: input, shape index: {}]
  %s3 = inlined_call_operand.vmem [shape: f32[128,128], index: 3, kind: input, shape index: {}]
  %s4 = inlined_call_operand.vmem [shape: f32[1,128], index: 4, kind: input, shape index: {}]
  %s5 = inlined_call_operand.vmem [shape: f32[128,128], index: 5, kind: input, shape index: {}]
  %s6 = inlined_call_operand.vmem [shape: f32[1,128], index: 6, kind: input, shape index: {}]
  %s7 = inlined_call_operand.vmem [shape: f32[256,128], index: 7, kind: output, shape index: {}]
  %s8 = sld [smem:[#allocation0]]
  $region61: #{dummy_nn_forward.1} parent=0
    _
  %s10 = ssub.s32 1, %s8
  %s11 = scalar_select 0, %s10, %s8
  loop: start=0, step=1, limit=4
  $region2: #{dummy_nn_forward.1} parent=0 // loop_pre_header
    _
  $region3: #{dummy_nn_forward.1} parent=0 // loop_header
    %s13 = sphi 0, %s17
    %p14 = scmp.ge.s32.totalorder %s13, 4
    %s23 = sphi 0, %s25
    %s26 = sphi 0, %s23
    %s27 = sphi 0, %s26
    %s43 = sphi 0, %s27
    %s47 = sphi 0, %s47
    %s49 = sphi 0, %s47
    %s50 = sphi 0, %s49
    %s64 = sphi 0, %s50
    %s68 = sphi 0, %s68
    %s70 = sphi 0, %s68
    %s71 = sphi 0, %s70
    %s85 = sphi 0, %s71
    %s89 = sphi 0, %s89
    %s91 = sphi 0, %s89
    %s92 = sphi 0, %s91
    %s106 = sphi 0, %s92
    %s110 = sphi 0, %s110
    %s112 = sphi 0, %s110
    %s113 = sphi 0, %s112
    %s127 = sphi 0, %s113
    %s131 = sphi 0, %s131
    %s133 = sphi 0, %s131
    %s134 = sphi 0, %s133
    %s148 = sphi 0, %s134
    %s152 = sphi 0, %s152
    %s154 = sphi 0, %s152
    %s155 = sphi 0, %s154
    %s169 = sphi 0, %s155
    %s175 = sphi 0, %s177
    %s178 = sphi 0, %s175
    %s179 = sphi 0, %s178
    %s195 = sphi 0, %s179
  $region4: #{dummy_nn_forward.1} parent=0 // loop_header_branch
    %16 = sbr.rel (%p14) target = $region8
  $region5: #{dummy_nn_forward.1} parent=0 // loop_body
    %s18 = ssub.s32 %s13, 1
    %s19 = ssub.s32 %s13, 2
    %s20 = sadd.s32 %s13, 1
    %s21 = ssub.s32 %s13, %s20
    %p22 = scmp.eq.s32.totalorder %s21, 0
    %s24 = sadd.s32 %s23, 1
    %s25 = scalar_select %p22, %s23, %s24
    %p28 = pneg %p22
    %p29 = scmp.eq.s32.totalorder %s13, 1
    %p30 = por %p28, %p29
    %p31 = scmp.ne.s32.totalorder %s23, %s26
    %p32 = scmp.eq.s32.totalorder %s13, 0
    %p33 = por %p31, %p32
    %p34 = scmp.ne.s32.totalorder %s23, %s26
    %p35 = scmp.eq.s32.totalorder %s18, 1
    %p36 = por %p34, %p35
    %p37 = scmp.ne.s32.totalorder %s26, %s27
    %p38 = scmp.eq.s32.totalorder %s18, 0
    %p39 = por %p37, %p38
    %p40 = scmp.ne.s32.totalorder %s26, %s27
    %p41 = scmp.eq.s32.totalorder %s19, 1
    %p42 = por %p40, %p41
    %p44 = scmp.ne.s32.totalorder %s27, %s43
    %p45 = scmp.eq.s32.totalorder %s19, 0
    %p46 = por %p44, %p45
    %s48 = sadd.s32 %s47, 1
    %p51 = scmp.eq.s32.totalorder %s13, 1
    %p52 = scmp.ne.s32.totalorder %s47, %s49
    %p53 = scmp.eq.s32.totalorder %s13, 0
    %p54 = por %p52, %p53
    %p55 = scmp.ne.s32.totalorder %s47, %s49
    %p56 = scmp.eq.s32.totalorder %s18, 1
    %p57 = por %p55, %p56
    %p58 = scmp.ne.s32.totalorder %s49, %s50
    %p59 = scmp.eq.s32.totalorder %s18, 0
    %p60 = por %p58, %p59
    %p61 = scmp.ne.s32.totalorder %s49, %s50
    %p62 = scmp.eq.s32.totalorder %s19, 1
    %p63 = por %p61, %p62
    %p65 = scmp.ne.s32.totalorder %s50, %s64
    %p66 = scmp.eq.s32.totalorder %s19, 0
    %p67 = por %p65, %p66
    %s69 = sadd.s32 %s68, 1
    %p72 = scmp.eq.s32.totalorder %s13, 1
    %p73 = scmp.ne.s32.totalorder %s68, %s70
    %p74 = scmp.eq.s32.totalorder %s13, 0
    %p75 = por %p73, %p74
    %p76 = scmp.ne.s32.totalorder %s68, %s70
    %p77 = scmp.eq.s32.totalorder %s18, 1
    %p78 = por %p76, %p77
    %p79 = scmp.ne.s32.totalorder %s70, %s71
    %p80 = scmp.eq.s32.totalorder %s18, 0
    %p81 = por %p79, %p80
    %p82 = scmp.ne.s32.totalorder %s70, %s71
    %p83 = scmp.eq.s32.totalorder %s19, 1
    %p84 = por %p82, %p83
    %p86 = scmp.ne.s32.totalorder %s71, %s85
    %p87 = scmp.eq.s32.totalorder %s19, 0
    %p88 = por %p86, %p87
    %s90 = sadd.s32 %s89, 1
    %p93 = scmp.eq.s32.totalorder %s13, 1
    %p94 = scmp.ne.s32.totalorder %s89, %s91
    %p95 = scmp.eq.s32.totalorder %s13, 0
    %p96 = por %p94, %p95
    %p97 = scmp.ne.s32.totalorder %s89, %s91
    %p98 = scmp.eq.s32.totalorder %s18, 1
    %p99 = por %p97, %p98
    %p100 = scmp.ne.s32.totalorder %s91, %s92
    %p101 = scmp.eq.s32.totalorder %s18, 0
    %p102 = por %p100, %p101
    %p103 = scmp.ne.s32.totalorder %s91, %s92
    %p104 = scmp.eq.s32.totalorder %s19, 1
    %p105 = por %p103, %p104
    %p107 = scmp.ne.s32.totalorder %s92, %s106
    %p108 = scmp.eq.s32.totalorder %s19, 0
    %p109 = por %p107, %p108
    %s111 = sadd.s32 %s110, 1
    %p114 = scmp.eq.s32.totalorder %s13, 1
    %p115 = scmp.ne.s32.totalorder %s110, %s112
    %p116 = scmp.eq.s32.totalorder %s13, 0
    %p117 = por %p115, %p116
    %p118 = scmp.ne.s32.totalorder %s110, %s112
    %p119 = scmp.eq.s32.totalorder %s18, 1
    %p120 = por %p118, %p119
    %p121 = scmp.ne.s32.totalorder %s112, %s113
    %p122 = scmp.eq.s32.totalorder %s18, 0
    %p123 = por %p121, %p122
    %p124 = scmp.ne.s32.totalorder %s112, %s113
    %p125 = scmp.eq.s32.totalorder %s19, 1
    %p126 = por %p124, %p125
    %p128 = scmp.ne.s32.totalorder %s113, %s127
    %p129 = scmp.eq.s32.totalorder %s19, 0
    %p130 = por %p128, %p129
    %s132 = sadd.s32 %s131, 1
    %p135 = scmp.eq.s32.totalorder %s13, 1
    %p136 = scmp.ne.s32.totalorder %s131, %s133
    %p137 = scmp.eq.s32.totalorder %s13, 0
    %p138 = por %p136, %p137
    %p139 = scmp.ne.s32.totalorder %s131, %s133
    %p140 = scmp.eq.s32.totalorder %s18, 1
    %p141 = por %p139, %p140
    %p142 = scmp.ne.s32.totalorder %s133, %s134
    %p143 = scmp.eq.s32.totalorder %s18, 0
    %p144 = por %p142, %p143
    %p145 = scmp.ne.s32.totalorder %s133, %s134
    %p146 = scmp.eq.s32.totalorder %s19, 1
    %p147 = por %p145, %p146
    %p149 = scmp.ne.s32.totalorder %s134, %s148
    %p150 = scmp.eq.s32.totalorder %s19, 0
    %p151 = por %p149, %p150
    %s153 = sadd.s32 %s152, 1
    %p156 = scmp.eq.s32.totalorder %s13, 1
    %p157 = scmp.ne.s32.totalorder %s152, %s154
    %p158 = scmp.eq.s32.totalorder %s13, 0
    %p159 = por %p157, %p158
    %p160 = scmp.ne.s32.totalorder %s152, %s154
    %p161 = scmp.eq.s32.totalorder %s18, 1
    %p162 = por %p160, %p161
    %p163 = scmp.ne.s32.totalorder %s154, %s155
    %p164 = scmp.eq.s32.totalorder %s18, 0
    %p165 = por %p163, %p164
    %p166 = scmp.ne.s32.totalorder %s154, %s155
    %p167 = scmp.eq.s32.totalorder %s19, 1
    %p168 = por %p166, %p167
    %p170 = scmp.ne.s32.totalorder %s155, %s169
    %p171 = scmp.eq.s32.totalorder %s19, 0
    %p172 = por %p170, %p171
    %s173 = ssub.s32 %s13, %s20
    %p174 = scmp.eq.s32.totalorder %s173, 0
    %s176 = sadd.s32 %s175, 1
    %s177 = scalar_select %p174, %s175, %s176
    %p180 = pneg %p174
    %p181 = scmp.eq.s32.totalorder %s13, 1
    %p182 = por %p180, %p181
    %p183 = scmp.ne.s32.totalorder %s175, %s178
    %p184 = scmp.eq.s32.totalorder %s13, 0
    %p185 = por %p183, %p184
    %p186 = scmp.ne.s32.totalorder %s175, %s178
    %p187 = scmp.eq.s32.totalorder %s18, 1
    %p188 = por %p186, %p187
    %p189 = scmp.ne.s32.totalorder %s178, %s179
    %p190 = scmp.eq.s32.totalorder %s18, 0
    %p191 = por %p189, %p190
    %p192 = scmp.ne.s32.totalorder %s178, %s179
    %p193 = scmp.eq.s32.totalorder %s19, 1
    %p194 = por %p192, %p193
    %p196 = scmp.ne.s32.totalorder %s179, %s195
    %p197 = scmp.eq.s32.totalorder %s19, 0
    %p198 = por %p196, %p197
    %p199 = scmp.le.s32.totalorder 1, %s13
    %p200 = scmp.lt.s32.totalorder %s13, 3
    %p201 = pnand %p199, %p200
    %p202 = pneg %p201
    // Predicated region
    $region9: #{dummy_nn_forward.1} parent=5 // pred_check
      _
    $region10: #{dummy_nn_forward.1} parent=5 // pred_check_branch
      %204 = sbr.rel (%p201) target = $region12
    $region11: #{dummy_nn_forward.1} parent=5 // pred_region
      %s205 = ssub.s32 %s13, 1
      // Predicated region
      $region13: #{dummy_nn_forward.1} parent=11 // pred_check
        %p206 = pneg %p60
      $region14: #{dummy_nn_forward.1} parent=11 // pred_check_branch
        %208 = sbr.rel (%p206) target = $region16
      $region15: #{dummy_nn_forward.1} parent=11 // pred_region
        _
      $region16: #{dummy_nn_forward.1} parent=11 // pred_fallthru
        _
      // Predicated region
      $region17: #{dummy_nn_forward.1} parent=11 // pred_check
        %p209 = pneg %p81
      $region18: #{dummy_nn_forward.1} parent=11 // pred_check_branch
        %211 = sbr.rel (%p209) target = $region20
      $region19: #{dummy_nn_forward.1} parent=11 // pred_region
        _
      $region20: #{dummy_nn_forward.1} parent=11 // pred_fallthru
        _
      // Predicated region
      $region21: #{dummy_nn_forward.1} parent=11 // pred_check
        %p212 = pneg %p102
      $region22: #{dummy_nn_forward.1} parent=11 // pred_check_branch
        %214 = sbr.rel (%p212) target = $region24
      $region23: #{dummy_nn_forward.1} parent=11 // pred_region
        _
      $region24: #{dummy_nn_forward.1} parent=11 // pred_fallthru
        _
      // Predicated region
      $region25: #{dummy_nn_forward.1} parent=11 // pred_check
        %p215 = pneg %p123
      $region26: #{dummy_nn_forward.1} parent=11 // pred_check_branch
        %217 = sbr.rel (%p215) target = $region28
      $region27: #{dummy_nn_forward.1} parent=11 // pred_region
        _
      $region28: #{dummy_nn_forward.1} parent=11 // pred_fallthru
        _
      // Predicated region
      $region29: #{dummy_nn_forward.1} parent=11 // pred_check
        %p218 = pneg %p144
      $region30: #{dummy_nn_forward.1} parent=11 // pred_check_branch
        %220 = sbr.rel (%p218) target = $region32
      $region31: #{dummy_nn_forward.1} parent=11 // pred_region
        _
      $region32: #{dummy_nn_forward.1} parent=11 // pred_fallthru
        _
      // Predicated region
      $region33: #{dummy_nn_forward.1} parent=11 // pred_check
        %p221 = pneg %p165
      $region34: #{dummy_nn_forward.1} parent=11 // pred_check_branch
        %223 = sbr.rel (%p221) target = $region36
      $region35: #{dummy_nn_forward.1} parent=11 // pred_region
        _
      $region36: #{dummy_nn_forward.1} parent=11 // pred_fallthru
        _
    $region12: #{dummy_nn_forward.1} parent=5 // pred_fallthru
      _
    %p224 = scmp.lt.s32.totalorder %s13, 2
    // Predicated region
    $region37: #{dummy_nn_forward.1} parent=5 // pred_check
      %p225 = pneg %p224
    $region38: #{dummy_nn_forward.1} parent=5 // pred_check_branch
      %227 = sbr.rel (%p225) target = $region40
    $region39: #{dummy_nn_forward.1} parent=5 // pred_region
      // Predicated region
      $region41: #{dummy_nn_forward.1} parent=39 // pred_check
        %p228 = pneg %p33
      $region42: #{dummy_nn_forward.1} parent=39 // pred_check_branch
        %230 = sbr.rel (%p228) target = $region44
      $region43: #{dummy_nn_forward.1} parent=39 // pred_region
        %s231 = smul.u32 16, %s13
        %p232 = scmp.lt.s32.totalorder %s231, 31
        %s233 = scalar_select %p232, %s231, 31
        %s234 = smul.addr %s233, 2
        %s235 = smul.addr %s234, 8
        %s236 = scalar_lea.vmem %s0, %s235
        %s237 = smul.u32 16, %s13
      $region44: #{dummy_nn_forward.1} parent=39 // pred_fallthru
        _
    $region40: #{dummy_nn_forward.1} parent=5 // pred_fallthru
      _
    %p238 = scmp.le.s32.totalorder 1, %s13
    %p239 = scmp.lt.s32.totalorder %s13, 3
    %p240 = pnand %p238, %p239
    %p241 = pneg %p240
    // Predicated region
    $region45: #{dummy_nn_forward.1} parent=5 // pred_check
      _
    $region46: #{dummy_nn_forward.1} parent=5 // pred_check_branch
      %243 = sbr.rel (%p240) target = $region48
    $region47: #{dummy_nn_forward.1} parent=5 // pred_region
      %s244 = ssub.s32 %s13, 1
      %s245 = smul.u32 16, %s18
      %p246 = scmp.lt.s32.totalorder %s245, 31
      %s247 = scalar_select %p246, %s245, 31
      %s248 = smul.addr %s247, 2
      %s249 = smul.addr %s248, 8
      %s250 = scalar_lea.vmem %s0, %s249
      %p251 = pneg %p39
      %p252 = pneg %p36
      %p253 = pneg %p60
      %p254 = pneg %p57
      %p255 = pneg %p81
      %p256 = pneg %p78
      %p257 = pneg %p102
      %p258 = pneg %p99
      %p259 = pneg %p123
      %p260 = pneg %p120
      %p261 = pneg %p144
      %p262 = pneg %p141
      %p263 = pneg %p165
      %p264 = pneg %p162
      %p265 = pneg %p191
      %p266 = pneg %p188
      %s267 = smul.u32 16, %s18
      %p268 = scmp.lt.s32.totalorder %s267, 31
      %s269 = scalar_select %p268, %s267, 31
      %s270 = smul.addr %s269, 8
      %s271 = scalar_lea.vmem %s7, %s270
      %s272 = smul.u32 16, %s18
      %p273 = scmp.lt.s32.totalorder %s272, 31
      %s274 = scalar_select %p273, %s272, 31
      %s275 = smul.addr %s274, 2
      %s276 = smul.addr %s275, 8
      %s277 = scalar_lea.vmem %s0, %s276
      %s278 = smul.u32 16, %s18
      %s279 = smul.u32 16, %s18
      %p280 = scmp.lt.s32.totalorder %s279, 31
      %s281 = scalar_select %p280, %s279, 31
      %s282 = smul.addr %s281, 8
      %s283 = scalar_lea.vmem %s7, %s282
      %s284 = smul.u32 16, %s18
      %v285 = vld [vmem:[%s277] sm:$0xff]
      %v286 = vld [vmem:[%s277 + $0x8] sm:$0xff]
      %v287 = vld [vmem:[%s277 + $0x10] sm:$0xff]
      %v288 = vld [vmem:[%s277 + $0x18] sm:$0xff]
      %v289 = vld [vmem:[%s277 + $0x20] sm:$0xff]
      %v290 = vld [vmem:[%s277 + $0x28] sm:$0xff]
      %v291 = vld [vmem:[%s277 + $0x30] sm:$0xff]
      %v292 = vld [vmem:[%s277 + $0x38] sm:$0xff]
      %v293 = vld [vmem:[%s277 + $0x40] sm:$0xff]
      %v294 = vld [vmem:[%s277 + $0x48] sm:$0xff]
      %v295 = vld [vmem:[%s277 + $0x50] sm:$0xff]
      %v296 = vld [vmem:[%s277 + $0x58] sm:$0xff]
      %v297 = vld [vmem:[%s277 + $0x60] sm:$0xff]
      %v298 = vld [vmem:[%s277 + $0x68] sm:$0xff]
      %v299 = vld [vmem:[%s277 + $0x70] sm:$0xff]
      %v300 = vld [vmem:[%s277 + $0x78] sm:$0xff]
      %v301 = vld [vmem:[%s277 + $0x80] sm:$0xff]
      %v302 = vld [vmem:[%s277 + $0x88] sm:$0xff]
      %v303 = vld [vmem:[%s277 + $0x90] sm:$0xff]
      %v304 = vld [vmem:[%s277 + $0x98] sm:$0xff]
      %v305 = vld [vmem:[%s277 + $0xa0] sm:$0xff]
      %v306 = vld [vmem:[%s277 + $0xa8] sm:$0xff]
      %v307 = vld [vmem:[%s277 + $0xb0] sm:$0xff]
      %v308 = vld [vmem:[%s277 + $0xb8] sm:$0xff]
      %v309 = vld [vmem:[%s277 + $0xc0] sm:$0xff]
      %v310 = vld [vmem:[%s277 + $0xc8] sm:$0xff]
      %v311 = vld [vmem:[%s277 + $0xd0] sm:$0xff]
      %v312 = vld [vmem:[%s277 + $0xd8] sm:$0xff]
      %v313 = vld [vmem:[%s277 + $0xe0] sm:$0xff]
      %v314 = vld [vmem:[%s277 + $0xe8] sm:$0xff]
      %v315 = vld [vmem:[%s277 + $0xf0] sm:$0xff]
      %v316 = vld [vmem:[%s277 + $0xf8] sm:$0xff]
      %v317 = vld [vmem:[%s1] sm:$0xff]
      %v318 = vld [vmem:[%s1 + $0x8] sm:$0xff]
      %v319 = vld [vmem:[%s1 + $0x10] sm:$0xff]
      %v320 = vld [vmem:[%s1 + $0x18] sm:$0xff]
      %v321 = vld [vmem:[%s1 + $0x20] sm:$0xff]
      %v322 = vld [vmem:[%s1 + $0x28] sm:$0xff]
      %v323 = vld [vmem:[%s1 + $0x30] sm:$0xff]
      %v324 = vld [vmem:[%s1 + $0x38] sm:$0xff]
      %v325 = vld [vmem:[%s1 + $0x40] sm:$0xff]
      %v326 = vld [vmem:[%s1 + $0x48] sm:$0xff]
      %v327 = vld [vmem:[%s1 + $0x50] sm:$0xff]
      %v328 = vld [vmem:[%s1 + $0x58] sm:$0xff]
      %v329 = vld [vmem:[%s1 + $0x60] sm:$0xff]
      %v330 = vld [vmem:[%s1 + $0x68] sm:$0xff]
      %v331 = vld [vmem:[%s1 + $0x70] sm:$0xff]
      %v332 = vld [vmem:[%s1 + $0x78] sm:$0xff]
      %v333 = vld [vmem:[%s1 + $0x80] sm:$0xff]
      %v334 = vld [vmem:[%s1 + $0x88] sm:$0xff]
      %v335 = vld [vmem:[%s1 + $0x90] sm:$0xff]
      %v336 = vld [vmem:[%s1 + $0x98] sm:$0xff]
      %v337 = vld [vmem:[%s1 + $0xa0] sm:$0xff]
      %v338 = vld [vmem:[%s1 + $0xa8] sm:$0xff]
      %v339 = vld [vmem:[%s1 + $0xb0] sm:$0xff]
      %v340 = vld [vmem:[%s1 + $0xb8] sm:$0xff]
      %v341 = vld [vmem:[%s1 + $0xc0] sm:$0xff]
      %v342 = vld [vmem:[%s1 + $0xc8] sm:$0xff]
      %v343 = vld [vmem:[%s1 + $0xd0] sm:$0xff]
      %v344 = vld [vmem:[%s1 + $0xd8] sm:$0xff]
      %v345 = vld [vmem:[%s1 + $0xe0] sm:$0xff]
      %v346 = vld [vmem:[%s1 + $0xe8] sm:$0xff]
      %v347 = vld [vmem:[%s1 + $0xf0] sm:$0xff]
      %v348 = vld [vmem:[%s1 + $0xf8] sm:$0xff]
      %v349 = vld [vmem:[%s2] sm:$0x1]
      %v351 = vlaneseq
      %v352 = vshrl.u32 %v351, 7
      %v353 = vsub.s32 0, %v352
      %v354 = vrot.slane %v349, %v353
      %356 = vmatprep.subr.mxu0 0.0
      %357 = vmatpush1.msra.mxu0 %v317
      %358 = vmatprep.subr.mxu0 0.0
      %359 = vmatpush1.msra.mxu0 %v318
      %360 = vmatprep.subr.mxu0 0.0
      %361 = vmatpush1.msra.mxu0 %v319
      %362 = vmatprep.subr.mxu0 0.0
      %363 = vmatpush1.msra.mxu0 %v320
      %364 = vmatprep.subr.mxu0 0.0
      %365 = vmatpush1.msra.mxu0 %v321
      %366 = vmatprep.subr.mxu0 0.0
      %367 = vmatpush1.msra.mxu0 %v322
      %368 = vmatprep.subr.mxu0 0.0
      %369 = vmatpush1.msra.mxu0 %v323
      %370 = vmatprep.subr.mxu0 0.0
      %371 = vmatpush1.msra.mxu0 %v324
      %372 = vmatprep.subr.mxu0 0.0
      %373 = vmatpush1.msra.mxu0 %v325
      %374 = vmatprep.subr.mxu0 0.0
      %375 = vmatpush1.msra.mxu0 %v326
      %376 = vmatprep.subr.mxu0 0.0
      %377 = vmatpush1.msra.mxu0 %v327
      %378 = vmatprep.subr.mxu0 0.0
      %379 = vmatpush1.msra.mxu0 %v328
      %380 = vmatprep.subr.mxu0 0.0
      %381 = vmatpush1.msra.mxu0 %v329
      %382 = vmatprep.subr.mxu0 0.0
      %383 = vmatpush1.msra.mxu0 %v330
      %384 = vmatprep.subr.mxu0 0.0
      %385 = vmatpush1.msra.mxu0 %v331
      %386 = vmatprep.subr.mxu0 0.0
      %387 = vmatpush1.msra.mxu0 %v332
      %388 = vmatprep.subr.mxu0 0.0
      %389 = vmatpush1.msra.mxu0 %v333
      %390 = vmatprep.subr.mxu0 0.0
      %391 = vmatpush1.msra.mxu0 %v334
      %392 = vmatprep.subr.mxu0 0.0
      %393 = vmatpush1.msra.mxu0 %v335
      %394 = vmatprep.subr.mxu0 0.0
      %395 = vmatpush1.msra.mxu0 %v336
      %396 = vmatprep.subr.mxu0 0.0
      %397 = vmatpush1.msra.mxu0 %v337
      %398 = vmatprep.subr.mxu0 0.0
      %399 = vmatpush1.msra.mxu0 %v338
      %400 = vmatprep.subr.mxu0 0.0
      %401 = vmatpush1.msra.mxu0 %v339
      %402 = vmatprep.subr.mxu0 0.0
      %403 = vmatpush1.msra.mxu0 %v340
      %404 = vmatprep.subr.mxu0 0.0
      %405 = vmatpush1.msra.mxu0 %v341
      %406 = vmatprep.subr.mxu0 0.0
      %407 = vmatpush1.msra.mxu0 %v342
      %408 = vmatprep.subr.mxu0 0.0
      %409 = vmatpush1.msra.mxu0 %v343
      %410 = vmatprep.subr.mxu0 0.0
      %411 = vmatpush1.msra.mxu0 %v344
      %412 = vmatprep.subr.mxu0 0.0
      %413 = vmatpush1.msra.mxu0 %v345
      %414 = vmatprep.subr.mxu0 0.0
      %415 = vmatpush1.msra.mxu0 %v346
      %416 = vmatprep.subr.mxu0 0.0
      %417 = vmatpush1.msra.mxu0 %v347
      %418 = vmatprep.subr.mxu0 0.0
      %419 = vmatpush1.msra.mxu0 %v348
      %420 = vmatprep.mubr.f32.mxu0 %v286
      %421 = vmatmul.mubr.f32.gmra.mrb[0].mxu0 %v285
      %v422 = vpop.f32.mrb[0].mxu0
      %v423 = vadd.f32 %v354, %v422
      %v424 = vpop.f32.mrb[0].mxu0
      %425 = vmatprep.mubr.f32.mxu0 %v288
      %426 = vmatmul.mubr.f32.gmra.mrb[0].mxu0 %v287
      %v427 = vpop.f32.mrb[0].mxu0
      %v428 = vadd.f32 %v354, %v427
      %v429 = vpop.f32.mrb[0].mxu0
      %430 = vmatprep.mubr.f32.mxu0 %v290
      %431 = vmatmul.mubr.f32.gmra.mrb[0].mxu0 %v289
      %v432 = vpop.f32.mrb[0].mxu0
      %v433 = vadd.f32 %v354, %v432
      %v434 = vpop.f32.mrb[0].mxu0
      %435 = vmatprep.mubr.f32.mxu0 %v292
      %436 = vmatmul.mubr.f32.gmra.mrb[0].mxu0 %v291
      %v437 = vpop.f32.mrb[0].mxu0
      %v438 = vadd.f32 %v354, %v437
      %v439 = vpop.f32.mrb[0].mxu0
      %440 = vmatprep.mubr.f32.mxu0 %v294
      %441 = vmatmul.mubr.f32.gmra.mrb[0].mxu0 %v293
      %v442 = vpop.f32.mrb[0].mxu0
      %v443 = vadd.f32 %v354, %v442
      %v444 = vpop.f32.mrb[0].mxu0
      %445 = vmatprep.mubr.f32.mxu0 %v296
      %446 = vmatmul.mubr.f32.gmra.mrb[0].mxu0 %v295
      %v447 = vpop.f32.mrb[0].mxu0
      %v448 = vadd.f32 %v354, %v447
      %v449 = vpop.f32.mrb[0].mxu0
      %450 = vmatprep.mubr.f32.mxu0 %v298
      %451 = vmatmul.mubr.f32.gmra.mrb[0].mxu0 %v297
      %v452 = vpop.f32.mrb[0].mxu0
      %v453 = vadd.f32 %v354, %v452
      %v454 = vpop.f32.mrb[0].mxu0
      %455 = vmatprep.mubr.f32.mxu0 %v300
      %456 = vmatmul.mubr.f32.gmra.mrb[0].mxu0 %v299
      %v457 = vpop.f32.mrb[0].mxu0
      %v458 = vadd.f32 %v354, %v457
      %v459 = vpop.f32.mrb[0].mxu0
      %460 = vmatprep.mubr.f32.mxu0 %v302
      %461 = vmatmul.mubr.f32.gmra.mrb[0].mxu0 %v301
      %v462 = vpop.f32.mrb[0].mxu0
      %v463 = vadd.f32 %v354, %v462
      %v464 = vpop.f32.mrb[0].mxu0
      %465 = vmatprep.mubr.f32.mxu0 %v304
      %466 = vmatmul.mubr.f32.gmra.mrb[0].mxu0 %v303
      %v467 = vpop.f32.mrb[0].mxu0
      %v468 = vadd.f32 %v354, %v467
      %v469 = vpop.f32.mrb[0].mxu0
      %470 = vmatprep.mubr.f32.mxu0 %v306
      %471 = vmatmul.mubr.f32.gmra.mrb[0].mxu0 %v305
      %v472 = vpop.f32.mrb[0].mxu0
      %v473 = vadd.f32 %v354, %v472
      %v474 = vpop.f32.mrb[0].mxu0
      %475 = vmatprep.mubr.f32.mxu0 %v308
      %476 = vmatmul.mubr.f32.gmra.mrb[0].mxu0 %v307
      %v477 = vpop.f32.mrb[0].mxu0
      %v478 = vadd.f32 %v354, %v477
      %v479 = vpop.f32.mrb[0].mxu0
      %480 = vmatprep.mubr.f32.mxu0 %v310
      %481 = vmatmul.mubr.f32.gmra.mrb[0].mxu0 %v309
      %v482 = vpop.f32.mrb[0].mxu0
      %v483 = vadd.f32 %v354, %v482
      %v484 = vpop.f32.mrb[0].mxu0
      %485 = vmatprep.mubr.f32.mxu0 %v312
      %486 = vmatmul.mubr.f32.gmra.mrb[0].mxu0 %v311
      %v487 = vpop.f32.mrb[0].mxu0
      %v488 = vadd.f32 %v354, %v487
      %v489 = vpop.f32.mrb[0].mxu0
      %490 = vmatprep.mubr.f32.mxu0 %v314
      %491 = vmatmul.mubr.f32.gmra.mrb[0].mxu0 %v313
      %v492 = vpop.f32.mrb[0].mxu0
      %v493 = vadd.f32 %v354, %v492
      %v494 = vpop.f32.mrb[0].mxu0
      %495 = vmatprep.mubr.f32.mxu0 %v316
      %496 = vmatmul.mubr.f32.gmra.mrb[0].mxu0 %v315
      %v497 = vpop.f32.mrb[0].mxu0
      %v498 = vadd.f32 %v354, %v497
      %v499 = vpop.f32.mrb[0].mxu0
      %500 = vdwg.mxu0
      %v501 = vmax.f32 %v423, 0.0
      %v502 = vmax.f32 %v428, 0.0
      %v503 = vmax.f32 %v433, 0.0
      %v504 = vmax.f32 %v438, 0.0
      %v505 = vmax.f32 %v443, 0.0
      %v506 = vmax.f32 %v448, 0.0
      %v507 = vmax.f32 %v453, 0.0
      %v508 = vmax.f32 %v458, 0.0
      %v509 = vmax.f32 %v463, 0.0
      %v510 = vmax.f32 %v468, 0.0
      %v511 = vmax.f32 %v473, 0.0
      %v512 = vmax.f32 %v478, 0.0
      %v513 = vmax.f32 %v483, 0.0
      %v514 = vmax.f32 %v488, 0.0
      %v515 = vmax.f32 %v493, 0.0
      %v516 = vmax.f32 %v498, 0.0
      %v517 = vld [vmem:[%s3] sm:$0xff]
      %v518 = vld [vmem:[%s3 + $0x8] sm:$0xff]
      %v519 = vld [vmem:[%s3 + $0x10] sm:$0xff]
      %v520 = vld [vmem:[%s3 + $0x18] sm:$0xff]
      %v521 = vld [vmem:[%s3 + $0x20] sm:$0xff]
      %v522 = vld [vmem:[%s3 + $0x28] sm:$0xff]
      %v523 = vld [vmem:[%s3 + $0x30] sm:$0xff]
      %v524 = vld [vmem:[%s3 + $0x38] sm:$0xff]
      %v525 = vld [vmem:[%s3 + $0x40] sm:$0xff]
      %v526 = vld [vmem:[%s3 + $0x48] sm:$0xff]
      %v527 = vld [vmem:[%s3 + $0x50] sm:$0xff]
      %v528 = vld [vmem:[%s3 + $0x58] sm:$0xff]
      %v529 = vld [vmem:[%s3 + $0x60] sm:$0xff]
      %v530 = vld [vmem:[%s3 + $0x68] sm:$0xff]
      %v531 = vld [vmem:[%s3 + $0x70] sm:$0xff]
      %v532 = vld [vmem:[%s3 + $0x78] sm:$0xff]
      %v533 = vld [vmem:[%s4] sm:$0x1]
      %v535 = vlaneseq
      %v536 = vshrl.u32 %v535, 7
      %v537 = vsub.s32 0, %v536
      %v538 = vrot.slane %v533, %v537
      %540 = vmatprep.subr.mxu0 0.0
      %541 = vmatpush1.msra.mxu0 %v517
      %542 = vmatprep.subr.mxu0 0.0
      %543 = vmatpush1.msra.mxu0 %v518
      %544 = vmatprep.subr.mxu0 0.0
      %545 = vmatpush1.msra.mxu0 %v519
      %546 = vmatprep.subr.mxu0 0.0
      %547 = vmatpush1.msra.mxu0 %v520
      %548 = vmatprep.subr.mxu0 0.0
      %549 = vmatpush1.msra.mxu0 %v521
      %550 = vmatprep.subr.mxu0 0.0
      %551 = vmatpush1.msra.mxu0 %v522
      %552 = vmatprep.subr.mxu0 0.0
      %553 = vmatpush1.msra.mxu0 %v523
      %554 = vmatprep.subr.mxu0 0.0
      %555 = vmatpush1.msra.mxu0 %v524
      %556 = vmatprep.subr.mxu0 0.0
      %557 = vmatpush1.msra.mxu0 %v525
      %558 = vmatprep.subr.mxu0 0.0
      %559 = vmatpush1.msra.mxu0 %v526
      %560 = vmatprep.subr.mxu0 0.0
      %561 = vmatpush1.msra.mxu0 %v527
      %562 = vmatprep.subr.mxu0 0.0
      %563 = vmatpush1.msra.mxu0 %v528
      %564 = vmatprep.subr.mxu0 0.0
      %565 = vmatpush1.msra.mxu0 %v529
      %566 = vmatprep.subr.mxu0 0.0
      %567 = vmatpush1.msra.mxu0 %v530
      %568 = vmatprep.subr.mxu0 0.0
      %569 = vmatpush1.msra.mxu0 %v531
      %570 = vmatprep.subr.mxu0 0.0
      %571 = vmatpush1.msra.mxu0 %v532
      %572 = vmatprep.subr.mxu0 0.0
      %573 = vmatpush1.msra.mxu0 0.0
      %574 = vmatprep.subr.mxu0 0.0
      %575 = vmatpush1.msra.mxu0 0.0
      %576 = vmatprep.subr.mxu0 0.0
      %577 = vmatpush1.msra.mxu0 0.0
      %578 = vmatprep.subr.mxu0 0.0
      %579 = vmatpush1.msra.mxu0 0.0
      %580 = vmatprep.subr.mxu0 0.0
      %581 = vmatpush1.msra.mxu0 0.0
      %582 = vmatprep.subr.mxu0 0.0
      %583 = vmatpush1.msra.mxu0 0.0
      %584 = vmatprep.subr.mxu0 0.0
      %585 = vmatpush1.msra.mxu0 0.0
      %586 = vmatprep.subr.mxu0 0.0
      %587 = vmatpush1.msra.mxu0 0.0
      %588 = vmatprep.subr.mxu0 0.0
      %589 = vmatpush1.msra.mxu0 0.0
      %590 = vmatprep.subr.mxu0 0.0
      %591 = vmatpush1.msra.mxu0 0.0
      %592 = vmatprep.subr.mxu0 0.0
      %593 = vmatpush1.msra.mxu0 0.0
      %594 = vmatprep.subr.mxu0 0.0
      %595 = vmatpush1.msra.mxu0 0.0
      %596 = vmatprep.subr.mxu0 0.0
      %597 = vmatpush1.msra.mxu0 0.0
      %598 = vmatprep.subr.mxu0 0.0
      %599 = vmatpush1.msra.mxu0 0.0
      %600 = vmatprep.subr.mxu0 0.0
      %601 = vmatpush1.msra.mxu0 0.0
      %602 = vmatprep.subr.mxu0 0.0
      %603 = vmatpush1.msra.mxu0 0.0
      %604 = vmatprep.mubr.f32.mxu0 0.0
      %605 = vmatmul.mubr.f32.gmra.mrb[0].mxu0 %v501
      %v606 = vpop.f32.mrb[0].mxu0
      %v607 = vadd.f32 %v538, %v606
      %v608 = vpop.f32.mrb[0].mxu0
      %609 = vmatprep.mubr.f32.mxu0 0.0
      %610 = vmatmul.mubr.f32.gmra.mrb[0].mxu0 %v502
      %v611 = vpop.f32.mrb[0].mxu0
      %v612 = vadd.f32 %v538, %v611
      %v613 = vpop.f32.mrb[0].mxu0
      %614 = vmatprep.mubr.f32.mxu0 0.0
      %615 = vmatmul.mubr.f32.gmra.mrb[0].mxu0 %v503
      %v616 = vpop.f32.mrb[0].mxu0
      %v617 = vadd.f32 %v538, %v616
      %v618 = vpop.f32.mrb[0].mxu0
      %619 = vmatprep.mubr.f32.mxu0 0.0
      %620 = vmatmul.mubr.f32.gmra.mrb[0].mxu0 %v504
      %v621 = vpop.f32.mrb[0].mxu0
      %v622 = vadd.f32 %v538, %v621
      %v623 = vpop.f32.mrb[0].mxu0
      %624 = vmatprep.mubr.f32.mxu0 0.0
      %625 = vmatmul.mubr.f32.gmra.mrb[0].mxu0 %v505
      %v626 = vpop.f32.mrb[0].mxu0
      %v627 = vadd.f32 %v538, %v626
      %v628 = vpop.f32.mrb[0].mxu0
      %629 = vmatprep.mubr.f32.mxu0 0.0
      %630 = vmatmul.mubr.f32.gmra.mrb[0].mxu0 %v506
      %v631 = vpop.f32.mrb[0].mxu0
      %v632 = vadd.f32 %v538, %v631
      %v633 = vpop.f32.mrb[0].mxu0
      %634 = vmatprep.mubr.f32.mxu0 0.0
      %635 = vmatmul.mubr.f32.gmra.mrb[0].mxu0 %v507
      %v636 = vpop.f32.mrb[0].mxu0
      %v637 = vadd.f32 %v538, %v636
      %v638 = vpop.f32.mrb[0].mxu0
      %639 = vmatprep.mubr.f32.mxu0 0.0
      %640 = vmatmul.mubr.f32.gmra.mrb[0].mxu0 %v508
      %v641 = vpop.f32.mrb[0].mxu0
      %v642 = vadd.f32 %v538, %v641
      %v643 = vpop.f32.mrb[0].mxu0
      %644 = vmatprep.mubr.f32.mxu0 0.0
      %645 = vmatmul.mubr.f32.gmra.mrb[0].mxu0 %v509
      %v646 = vpop.f32.mrb[0].mxu0
      %v647 = vadd.f32 %v538, %v646
      %v648 = vpop.f32.mrb[0].mxu0
      %649 = vmatprep.mubr.f32.mxu0 0.0
      %650 = vmatmul.mubr.f32.gmra.mrb[0].mxu0 %v510
      %v651 = vpop.f32.mrb[0].mxu0
      %v652 = vadd.f32 %v538, %v651
      %v653 = vpop.f32.mrb[0].mxu0
      %654 = vmatprep.mubr.f32.mxu0 0.0
      %655 = vmatmul.mubr.f32.gmra.mrb[0].mxu0 %v511
      %v656 = vpop.f32.mrb[0].mxu0
      %v657 = vadd.f32 %v538, %v656
      %v658 = vpop.f32.mrb[0].mxu0
      %659 = vmatprep.mubr.f32.mxu0 0.0
      %660 = vmatmul.mubr.f32.gmra.mrb[0].mxu0 %v512
      %v661 = vpop.f32.mrb[0].mxu0
      %v662 = vadd.f32 %v538, %v661
      %v663 = vpop.f32.mrb[0].mxu0
      %664 = vmatprep.mubr.f32.mxu0 0.0
      %665 = vmatmul.mubr.f32.gmra.mrb[0].mxu0 %v513
      %v666 = vpop.f32.mrb[0].mxu0
      %v667 = vadd.f32 %v538, %v666
      %v668 = vpop.f32.mrb[0].mxu0
      %669 = vmatprep.mubr.f32.mxu0 0.0
      %670 = vmatmul.mubr.f32.gmra.mrb[0].mxu0 %v514
      %v671 = vpop.f32.mrb[0].mxu0
      %v672 = vadd.f32 %v538, %v671
      %v673 = vpop.f32.mrb[0].mxu0
      %674 = vmatprep.mubr.f32.mxu0 0.0
      %675 = vmatmul.mubr.f32.gmra.mrb[0].mxu0 %v515
      %v676 = vpop.f32.mrb[0].mxu0
      %v677 = vadd.f32 %v538, %v676
      %v678 = vpop.f32.mrb[0].mxu0
      %679 = vmatprep.mubr.f32.mxu0 0.0
      %680 = vmatmul.mubr.f32.gmra.mrb[0].mxu0 %v516
      %v681 = vpop.f32.mrb[0].mxu0
      %v682 = vadd.f32 %v538, %v681
      %v683 = vpop.f32.mrb[0].mxu0
      %684 = vdwg.mxu0
      %v685 = vmax.f32 %v607, 0.0
      %v686 = vmax.f32 %v612, 0.0
      %v687 = vmax.f32 %v617, 0.0
      %v688 = vmax.f32 %v622, 0.0
      %v689 = vmax.f32 %v627, 0.0
      %v690 = vmax.f32 %v632, 0.0
      %v691 = vmax.f32 %v637, 0.0
      %v692 = vmax.f32 %v642, 0.0
      %v693 = vmax.f32 %v647, 0.0
      %v694 = vmax.f32 %v652, 0.0
      %v695 = vmax.f32 %v657, 0.0
      %v696 = vmax.f32 %v662, 0.0
      %v697 = vmax.f32 %v667, 0.0
      %v698 = vmax.f32 %v672, 0.0
      %v699 = vmax.f32 %v677, 0.0
      %v700 = vmax.f32 %v682, 0.0
      %v701 = vld [vmem:[%s5] sm:$0xff]
      %v702 = vld [vmem:[%s5 + $0x8] sm:$0xff]
      %v703 = vld [vmem:[%s5 + $0x10] sm:$0xff]
      %v704 = vld [vmem:[%s5 + $0x18] sm:$0xff]
      %v705 = vld [vmem:[%s5 + $0x20] sm:$0xff]
      %v706 = vld [vmem:[%s5 + $0x28] sm:$0xff]
      %v707 = vld [vmem:[%s5 + $0x30] sm:$0xff]
      %v708 = vld [vmem:[%s5 + $0x38] sm:$0xff]
      %v709 = vld [vmem:[%s5 + $0x40] sm:$0xff]
      %v710 = vld [vmem:[%s5 + $0x48] sm:$0xff]
      %v711 = vld [vmem:[%s5 + $0x50] sm:$0xff]
      %v712 = vld [vmem:[%s5 + $0x58] sm:$0xff]
      %v713 = vld [vmem:[%s5 + $0x60] sm:$0xff]
      %v714 = vld [vmem:[%s5 + $0x68] sm:$0xff]
      %v715 = vld [vmem:[%s5 + $0x70] sm:$0xff]
      %v716 = vld [vmem:[%s5 + $0x78] sm:$0xff]
      %v717 = vld [vmem:[%s6] sm:$0x1]
      %v719 = vlaneseq
      %v720 = vshrl.u32 %v719, 7
      %v721 = vsub.s32 0, %v720
      %v722 = vrot.slane %v717, %v721
      %724 = vmatprep.subr.mxu0 0.0
      %725 = vmatpush1.msra.mxu0 %v701
      %726 = vmatprep.subr.mxu0 0.0
      %727 = vmatpush1.msra.mxu0 %v702
      %728 = vmatprep.subr.mxu0 0.0
      %729 = vmatpush1.msra.mxu0 %v703
      %730 = vmatprep.subr.mxu0 0.0
      %731 = vmatpush1.msra.mxu0 %v704
      %732 = vmatprep.subr.mxu0 0.0
      %733 = vmatpush1.msra.mxu0 %v705
      %734 = vmatprep.subr.mxu0 0.0
      %735 = vmatpush1.msra.mxu0 %v706
      %736 = vmatprep.subr.mxu0 0.0
      %737 = vmatpush1.msra.mxu0 %v707
      %738 = vmatprep.subr.mxu0 0.0
      %739 = vmatpush1.msra.mxu0 %v708
      %740 = vmatprep.subr.mxu0 0.0
      %741 = vmatpush1.msra.mxu0 %v709
      %742 = vmatprep.subr.mxu0 0.0
      %743 = vmatpush1.msra.mxu0 %v710
      %744 = vmatprep.subr.mxu0 0.0
      %745 = vmatpush1.msra.mxu0 %v711
      %746 = vmatprep.subr.mxu0 0.0
      %747 = vmatpush1.msra.mxu0 %v712
      %748 = vmatprep.subr.mxu0 0.0
      %749 = vmatpush1.msra.mxu0 %v713
      %750 = vmatprep.subr.mxu0 0.0
      %751 = vmatpush1.msra.mxu0 %v714
      %752 = vmatprep.subr.mxu0 0.0
      %753 = vmatpush1.msra.mxu0 %v715
      %754 = vmatprep.subr.mxu0 0.0
      %755 = vmatpush1.msra.mxu0 %v716
      %756 = vmatprep.subr.mxu0 0.0
      %757 = vmatpush1.msra.mxu0 0.0
      %758 = vmatprep.subr.mxu0 0.0
      %759 = vmatpush1.msra.mxu0 0.0
      %760 = vmatprep.subr.mxu0 0.0
      %761 = vmatpush1.msra.mxu0 0.0
      %762 = vmatprep.subr.mxu0 0.0
      %763 = vmatpush1.msra.mxu0 0.0
      %764 = vmatprep.subr.mxu0 0.0
      %765 = vmatpush1.msra.mxu0 0.0
      %766 = vmatprep.subr.mxu0 0.0
      %767 = vmatpush1.msra.mxu0 0.0
      %768 = vmatprep.subr.mxu0 0.0
      %769 = vmatpush1.msra.mxu0 0.0
      %770 = vmatprep.subr.mxu0 0.0
      %771 = vmatpush1.msra.mxu0 0.0
      %772 = vmatprep.subr.mxu0 0.0
      %773 = vmatpush1.msra.mxu0 0.0
      %774 = vmatprep.subr.mxu0 0.0
      %775 = vmatpush1.msra.mxu0 0.0
      %776 = vmatprep.subr.mxu0 0.0
      %777 = vmatpush1.msra.mxu0 0.0
      %778 = vmatprep.subr.mxu0 0.0
      %779 = vmatpush1.msra.mxu0 0.0
      %780 = vmatprep.subr.mxu0 0.0
      %781 = vmatpush1.msra.mxu0 0.0
      %782 = vmatprep.subr.mxu0 0.0
      %783 = vmatpush1.msra.mxu0 0.0
      %784 = vmatprep.subr.mxu0 0.0
      %785 = vmatpush1.msra.mxu0 0.0
      %786 = vmatprep.subr.mxu0 0.0
      %787 = vmatpush1.msra.mxu0 0.0
      %788 = vmatprep.mubr.f32.mxu0 0.0
      %789 = vmatmul.mubr.f32.gmra.mrb[0].mxu0 %v685
      %v790 = vpop.f32.mrb[0].mxu0
      %v791 = vadd.f32 %v722, %v790
      %v792 = vpop.f32.mrb[0].mxu0
      %793 = vmatprep.mubr.f32.mxu0 0.0
      %794 = vmatmul.mubr.f32.gmra.mrb[0].mxu0 %v686
      %v795 = vpop.f32.mrb[0].mxu0
      %v796 = vadd.f32 %v722, %v795
      %v797 = vpop.f32.mrb[0].mxu0
      %798 = vmatprep.mubr.f32.mxu0 0.0
      %799 = vmatmul.mubr.f32.gmra.mrb[0].mxu0 %v687
      %v800 = vpop.f32.mrb[0].mxu0
      %v801 = vadd.f32 %v722, %v800
      %v802 = vpop.f32.mrb[0].mxu0
      %803 = vmatprep.mubr.f32.mxu0 0.0
      %804 = vmatmul.mubr.f32.gmra.mrb[0].mxu0 %v688
      %v805 = vpop.f32.mrb[0].mxu0
      %v806 = vadd.f32 %v722, %v805
      %v807 = vpop.f32.mrb[0].mxu0
      %808 = vmatprep.mubr.f32.mxu0 0.0
      %809 = vmatmul.mubr.f32.gmra.mrb[0].mxu0 %v689
      %v810 = vpop.f32.mrb[0].mxu0
      %v811 = vadd.f32 %v722, %v810
      %v812 = vpop.f32.mrb[0].mxu0
      %813 = vmatprep.mubr.f32.mxu0 0.0
      %814 = vmatmul.mubr.f32.gmra.mrb[0].mxu0 %v690
      %v815 = vpop.f32.mrb[0].mxu0
      %v816 = vadd.f32 %v722, %v815
      %v817 = vpop.f32.mrb[0].mxu0
      %818 = vmatprep.mubr.f32.mxu0 0.0
      %819 = vmatmul.mubr.f32.gmra.mrb[0].mxu0 %v691
      %v820 = vpop.f32.mrb[0].mxu0
      %v821 = vadd.f32 %v722, %v820
      %v822 = vpop.f32.mrb[0].mxu0
      %823 = vmatprep.mubr.f32.mxu0 0.0
      %824 = vmatmul.mubr.f32.gmra.mrb[0].mxu0 %v692
      %v825 = vpop.f32.mrb[0].mxu0
      %v826 = vadd.f32 %v722, %v825
      %v827 = vpop.f32.mrb[0].mxu0
      %828 = vmatprep.mubr.f32.mxu0 0.0
      %829 = vmatmul.mubr.f32.gmra.mrb[0].mxu0 %v693
      %v830 = vpop.f32.mrb[0].mxu0
      %v831 = vadd.f32 %v722, %v830
      %v832 = vpop.f32.mrb[0].mxu0
      %833 = vmatprep.mubr.f32.mxu0 0.0
      %834 = vmatmul.mubr.f32.gmra.mrb[0].mxu0 %v694
      %v835 = vpop.f32.mrb[0].mxu0
      %v836 = vadd.f32 %v722, %v835
      %v837 = vpop.f32.mrb[0].mxu0
      %838 = vmatprep.mubr.f32.mxu0 0.0
      %839 = vmatmul.mubr.f32.gmra.mrb[0].mxu0 %v695
      %v840 = vpop.f32.mrb[0].mxu0
      %v841 = vadd.f32 %v722, %v840
      %v842 = vpop.f32.mrb[0].mxu0
      %843 = vmatprep.mubr.f32.mxu0 0.0
      %844 = vmatmul.mubr.f32.gmra.mrb[0].mxu0 %v696
      %v845 = vpop.f32.mrb[0].mxu0
      %v846 = vadd.f32 %v722, %v845
      %v847 = vpop.f32.mrb[0].mxu0
      %848 = vmatprep.mubr.f32.mxu0 0.0
      %849 = vmatmul.mubr.f32.gmra.mrb[0].mxu0 %v697
      %v850 = vpop.f32.mrb[0].mxu0
      %v851 = vadd.f32 %v722, %v850
      %v852 = vpop.f32.mrb[0].mxu0
      %853 = vmatprep.mubr.f32.mxu0 0.0
      %854 = vmatmul.mubr.f32.gmra.mrb[0].mxu0 %v698
      %v855 = vpop.f32.mrb[0].mxu0
      %v856 = vadd.f32 %v722, %v855
      %v857 = vpop.f32.mrb[0].mxu0
      %858 = vmatprep.mubr.f32.mxu0 0.0
      %859 = vmatmul.mubr.f32.gmra.mrb[0].mxu0 %v699
      %v860 = vpop.f32.mrb[0].mxu0
      %v861 = vadd.f32 %v722, %v860
      %v862 = vpop.f32.mrb[0].mxu0
      %863 = vmatprep.mubr.f32.mxu0 0.0
      %864 = vmatmul.mubr.f32.gmra.mrb[0].mxu0 %v700
      %v865 = vpop.f32.mrb[0].mxu0
      %v866 = vadd.f32 %v722, %v865
      %v867 = vpop.f32.mrb[0].mxu0
      %868 = vdwg.mxu0
      %869 = vst [vmem:[%s283] sm:$0xff] %v791
      %870 = vst [vmem:[%s283 + $0x8] sm:$0xff] %v796
      %871 = vst [vmem:[%s283 + $0x10] sm:$0xff] %v801
      %872 = vst [vmem:[%s283 + $0x18] sm:$0xff] %v806
      %873 = vst [vmem:[%s283 + $0x20] sm:$0xff] %v811
      %874 = vst [vmem:[%s283 + $0x28] sm:$0xff] %v816
      %875 = vst [vmem:[%s283 + $0x30] sm:$0xff] %v821
      %876 = vst [vmem:[%s283 + $0x38] sm:$0xff] %v826
      %877 = vst [vmem:[%s283 + $0x40] sm:$0xff] %v831
      %878 = vst [vmem:[%s283 + $0x48] sm:$0xff] %v836
      %879 = vst [vmem:[%s283 + $0x50] sm:$0xff] %v841
      %880 = vst [vmem:[%s283 + $0x58] sm:$0xff] %v846
      %881 = vst [vmem:[%s283 + $0x60] sm:$0xff] %v851
      %882 = vst [vmem:[%s283 + $0x68] sm:$0xff] %v856
      %883 = vst [vmem:[%s283 + $0x70] sm:$0xff] %v861
      %884 = vst [vmem:[%s283 + $0x78] sm:$0xff] %v866
      %s885 = smul.u32 16, %s18
      %p886 = scmp.lt.s32.totalorder %s885, 31
      %s887 = scalar_select %p886, %s885, 31
      %s888 = smul.addr %s887, 8
      %s889 = scalar_lea.vmem %s7, %s888
      // Predicated region
      $region49: #{dummy_nn_forward.1} parent=47 // pred_check
        %p890 = pneg %p188
      $region50: #{dummy_nn_forward.1} parent=47 // pred_check_branch
        %892 = sbr.rel (%p890) target = $region52
      $region51: #{dummy_nn_forward.1} parent=47 // pred_region
        %s893 = smul.u32 16, %s18
      $region52: #{dummy_nn_forward.1} parent=47 // pred_fallthru
        _
    $region48: #{dummy_nn_forward.1} parent=5 // pred_fallthru
      _
    %p894 = scmp.le.s32.totalorder 2, %s13
    // Predicated region
    $region53: #{dummy_nn_forward.1} parent=5 // pred_check
      %p895 = pneg %p894
    $region54: #{dummy_nn_forward.1} parent=5 // pred_check_branch
      %897 = sbr.rel (%p895) target = $region56
    $region55: #{dummy_nn_forward.1} parent=5 // pred_region
      %s898 = ssub.s32 %s13, 2
      // Predicated region
      $region57: #{dummy_nn_forward.1} parent=55 // pred_check
        %p899 = pneg %p194
      $region58: #{dummy_nn_forward.1} parent=55 // pred_check_branch
        %901 = sbr.rel (%p899) target = $region60
      $region59: #{dummy_nn_forward.1} parent=55 // pred_region
        %s902 = smul.u32 16, %s19
        %p903 = scmp.lt.s32.totalorder %s902, 31
        %s904 = scalar_select %p903, %s902, 31
        %s905 = smul.addr %s904, 8
        %s906 = scalar_lea.vmem %s7, %s905
      $region60: #{dummy_nn_forward.1} parent=55 // pred_fallthru
        _
    $region56: #{dummy_nn_forward.1} parent=5 // pred_fallthru
      _
  $region6: #{dummy_nn_forward.1} parent=0 // loop_footer
    %s17 = sadd.s32 1, %s13
  $region7: #{dummy_nn_forward.1} parent=0 // loop_footer_branch
    %12 = sbr.rel target = $region3
  $region8: #{dummy_nn_forward.1} parent=0 // loop_exit
    _

</llo_original>
